<compile_context>
chip_gen: v5e
topology: v5e:2x2
jax: 0.10.0
libtpu: 0.0.40
codegen_flags: <defaults>
</compile_context>

<pallas_src>
import jax
import jax.numpy as jnp
from jax.experimental import pallas as pl
from jax.experimental.pallas import tpu as pltpu


def qnet_kernel(x_ref, w1_ref, b1_ref, w2_ref, b2_ref, w3_ref, b3_ref, o_ref):
    # x arrives f32; cast to bf16 in VMEM for the MXU, accumulate in f32, biases in f32.
    x = x_ref[...].astype(jnp.bfloat16)
    # Layer 1: Linear + bias + ReLU.
    h1 = jnp.dot(x, w1_ref[...], preferred_element_type=jnp.float32)
    h1 = jnp.maximum(h1 + b1_ref[...], 0.0).astype(jnp.bfloat16)
    # Layer 2: Linear + bias + ReLU.
    h2 = jnp.dot(h1, w2_ref[...], preferred_element_type=jnp.float32)
    h2 = jnp.maximum(h2 + b2_ref[...], 0.0).astype(jnp.bfloat16)
    # Layer 3: Linear + bias (Q-values, no activation); bf16 lane-dense padded store.
    out = jnp.dot(h2, w3_ref[...], preferred_element_type=jnp.float32)
    o_ref[...] = (out + b3_ref[...]).astype(o_ref.dtype)


def _round_up(n, m):
    return ((n + m - 1) // m) * m


def prepare_qnetwork_params(params):
    """One-time (per weight update) parameter prep, hoisted out of the forward path:
    cast weights to bf16, keep biases f32, zero-pad the final layer to a lane-dense
    128-wide output block. Weight layout is (in, out), i.e. PyTorch W.T."""
    hidden = params["w1"].shape[1]
    action_dim = params["w3"].shape[1]
    out_pad = _round_up(max(action_dim, 128), 128)
    w3 = jnp.zeros((hidden, out_pad), jnp.bfloat16).at[:, :action_dim].set(
        params["w3"].astype(jnp.bfloat16))
    b3 = jnp.zeros((1, out_pad), jnp.float32).at[:, :action_dim].set(
        params["b3"].astype(jnp.float32))
    return {
        "w1": params["w1"].astype(jnp.bfloat16),
        "b1": params["b1"].astype(jnp.float32),
        "w2": params["w2"].astype(jnp.bfloat16),
        "b2": params["b2"].astype(jnp.float32),
        "w3": w3,
        "b3": b3,
        "action_dim": int(action_dim),
    }


def _choose_tile(B, tile_b):
    """Batch-tile size: multiple of 16 (bf16 sublane packing), multiple of 256 for
    large tiles (MXU cadence on v6e/v7x), capped at tile_b, and >=2 grid steps for
    big batches so the "parallel" axis can shard across v7x's two TensorCores."""
    rows = _round_up(B, 16)
    if rows <= 512:
        return rows                       # single small tile (per-step / minibatch RL)
    half = _round_up((rows + 1) // 2, 256)  # never collapse a big batch to grid=(1,)
    tb = min(_round_up(tile_b, 256), half)
    return max(256, tb)


def qnetwork_forward(x, prepared, tile_b=4096):
    """x: (B, state_dim) f32. prepared: output of prepare_qnetwork_params.
    Computes relu(relu(x@w1+b1)@w2+b2)@w3+b3; returns (B, action_dim) f32."""
    B, state_dim = x.shape
    hidden = prepared["w1"].shape[1]
    action_dim = prepared["action_dim"]
    out_pad = prepared["w3"].shape[1]

    tb = _choose_tile(B, tile_b)
    n_tiles = pl.cdiv(B, tb)  # ragged last block is fine: OOB reads unused, OOB writes masked

    # Advisory cost estimate so XLA schedules the custom call sensibly.
    flops = 2 * B * (state_dim * hidden + hidden * hidden + hidden * out_pad)
    bytes_accessed = (
        B * state_dim * 4                                                   # x (f32)
        + (state_dim * hidden + hidden * hidden + hidden * out_pad) * 2     # weights (bf16)
        + (hidden + hidden + out_pad) * 4                                   # biases (f32)
        + B * out_pad * 2)                                                  # output (bf16)

    def resident(shape):
        # Full-array block, constant index -> stays in VMEM across grid steps.
        return pl.BlockSpec(shape, lambda i: (0, 0))

    out_padded = pl.pallas_call(
        qnet_kernel,
        out_shape=jax.ShapeDtypeStruct((B, out_pad), jnp.bfloat16),
        grid=(n_tiles,),
        in_specs=[
            pl.BlockSpec((tb, state_dim), lambda i: (i, 0)),
            resident(prepared["w1"].shape), resident(prepared["b1"].shape),
            resident(prepared["w2"].shape), resident(prepared["b2"].shape),
            resident(prepared["w3"].shape), resident(prepared["b3"].shape),
        ],
        out_specs=pl.BlockSpec((tb, out_pad), lambda i: (i, 0)),
        compiler_params=pltpu.CompilerParams(
            dimension_semantics=("parallel",),
            vmem_limit_bytes=32 * 1024 * 1024),
        cost_estimate=pl.CostEstimate(
            flops=flops, transcendentals=0, bytes_accessed=bytes_accessed),
    )(x, prepared["w1"], prepared["b1"], prepared["w2"], prepared["b2"],
      prepared["w3"], prepared["b3"])

    # Slice off the padded action lanes; upcast so the returned Q-values stay f32.
    return out_padded[:, :action_dim].astype(jnp.float32)


def init_qnetwork_params(key, state_dim, action_dim, hidden_size=128):
    """Mirrors PyTorch nn.Linear default init: U(-1/sqrt(fan_in), 1/sqrt(fan_in))."""
    dims = [(state_dim, hidden_size), (hidden_size, hidden_size), (hidden_size, action_dim)]
    params = {}
    for i, (fan_in, fan_out) in enumerate(dims, start=1):
        key, kw, kb = jax.random.split(key, 3)
        bound = 1.0 / (fan_in ** 0.5)
        params[f"w{i}"] = jax.random.uniform(
            kw, (fan_in, fan_out), jnp.float32, minval=-bound, maxval=bound)
        params[f"b{i}"] = jax.random.uniform(
            kb, (1, fan_out), jnp.float32, minval=-bound, maxval=bound)
    return params


def qnetwork_ref(x, params):
    h1 = jnp.maximum(x @ params["w1"] + params["b1"], 0.0)
    h2 = jnp.maximum(h1 @ params["w2"] + params["b2"], 0.0)
    return h2 @ params["w3"] + params["b3"]


if __name__ == "__main__":
    state_dim, action_dim, hidden = 8, 4, 128

    key = jax.random.PRNGKey(0)
    key, kx, kx2 = jax.random.split(key, 3)
    params = init_qnetwork_params(key, state_dim, action_dim, hidden)
    prepared = prepare_qnetwork_params(params)   # hoisted: once per weight update

    # Small, per-step-style batch. bf16 MXU operands / bf16 output store ->
    # compare against the f32 reference with a correspondingly loosened tolerance.
    x_small = jax.random.normal(kx, (2, state_dim), dtype=jnp.float32)
    out_small = jax.block_until_ready(qnetwork_forward(x_small, prepared))
    ref_small = qnetwork_ref(x_small, params)
    assert out_small.shape == (2, action_dim)
    assert jnp.allclose(out_small, ref_small, atol=2e-2, rtol=2e-2)

    # Larger batch exercising multiple grid tiles (ragged last block, megacore split).
    x_big = jax.random.normal(kx2, (1000, state_dim), dtype=jnp.float32)
    out_big = jax.block_until_ready(qnetwork_forward(x_big, prepared))
    ref_big = qnetwork_ref(x_big, params)
    assert out_big.shape == (1000, action_dim)
    assert jnp.allclose(out_big, ref_big, atol=2e-2, rtol=2e-2)

    print("KERNEL_OK")
</pallas_src>

<mosaic_0001>
module attributes {stable_mosaic.version = 11 : i64} {
  func.func @qnet_kernel(%arg0: i32, %arg1: memref<16x8xf32, #tpu.memory_space<vmem>>, %arg2: memref<8x128xbf16, #tpu.memory_space<vmem>>, %arg3: memref<1x128xf32, #tpu.memory_space<vmem>>, %arg4: memref<128x128xbf16, #tpu.memory_space<vmem>>, %arg5: memref<1x128xf32, #tpu.memory_space<vmem>>, %arg6: memref<128x128xbf16, #tpu.memory_space<vmem>>, %arg7: memref<1x128xf32, #tpu.memory_space<vmem>>, %arg8: memref<16x128xbf16, #tpu.memory_space<vmem>>) attributes {dimension_semantics = [#tpu.dimension_semantics<parallel>], iteration_bounds = array<i64: 1>, scalar_prefetch = 0 : i64, scratch_operands = 0 : i64, tpu.core_type = #tpu.core_type<tc>, window_params = [{transform_indices = @transform_0, window_bounds = array<i64: 16, 8>}, {pipeline_mode = #tpu.pipeline_mode<synchronous>, transform_indices = @transform_1, window_bounds = array<i64: 8, 128>}, {pipeline_mode = #tpu.pipeline_mode<synchronous>, transform_indices = @transform_2, window_bounds = array<i64: 1, 128>}, {pipeline_mode = #tpu.pipeline_mode<synchronous>, transform_indices = @transform_3, window_bounds = array<i64: 128, 128>}, {pipeline_mode = #tpu.pipeline_mode<synchronous>, transform_indices = @transform_4, window_bounds = array<i64: 1, 128>}, {pipeline_mode = #tpu.pipeline_mode<synchronous>, transform_indices = @transform_5, window_bounds = array<i64: 128, 128>}, {pipeline_mode = #tpu.pipeline_mode<synchronous>, transform_indices = @transform_6, window_bounds = array<i64: 1, 128>}, {transform_indices = @transform_7, window_bounds = array<i64: 16, 128>}]} {
    %c0 = arith.constant 0 : index
    %c0_0 = arith.constant 0 : index
    %0 = vector.load %arg1[%c0, %c0_0] : memref<16x8xf32, #tpu.memory_space<vmem>>, vector<16x8xf32>
    %1 = arith.truncf %0 : vector<16x8xf32> to vector<16x8xbf16>
    %c0_1 = arith.constant 0 : index
    %c0_2 = arith.constant 0 : index
    %2 = vector.load %arg2[%c0_1, %c0_2] : memref<8x128xbf16, #tpu.memory_space<vmem>>, vector<8x128xbf16>
    %cst = arith.constant dense<0.000000e+00> : vector<16x128xf32>
    %3 = tpu.matmul %1, %2, %cst {dimension_numbers = #tpu.dot_dimension_numbers<[1], [0], [0], [1], [0, 0, 1, 1], [], []>} : vector<16x8xbf16>, vector<8x128xbf16>, vector<16x128xf32> -> vector<16x128xf32>
    %c0_3 = arith.constant 0 : index
    %c0_4 = arith.constant 0 : index
    %4 = vector.load %arg3[%c0_3, %c0_4] : memref<1x128xf32, #tpu.memory_space<vmem>>, vector<1x128xf32>
    %5 = vector.broadcast %4 : vector<1x128xf32> to vector<16x128xf32>
    %6 = arith.addf %3, %5 : vector<16x128xf32>
    %cst_5 = arith.constant 0.000000e+00 : f32
    %7 = vector.broadcast %cst_5 : f32 to vector<16x128xf32>
    %8 = arith.maximumf %6, %7 : vector<16x128xf32>
    %9 = arith.truncf %8 : vector<16x128xf32> to vector<16x128xbf16>
    %c0_6 = arith.constant 0 : index
    %c0_7 = arith.constant 0 : index
    %10 = vector.load %arg4[%c0_6, %c0_7] : memref<128x128xbf16, #tpu.memory_space<vmem>>, vector<128x128xbf16>
    %cst_8 = arith.constant dense<0.000000e+00> : vector<16x128xf32>
    %11 = tpu.matmul %9, %10, %cst_8 {dimension_numbers = #tpu.dot_dimension_numbers<[1], [0], [0], [1], [0, 0, 1, 1], [], []>} : vector<16x128xbf16>, vector<128x128xbf16>, vector<16x128xf32> -> vector<16x128xf32>
    %c0_9 = arith.constant 0 : index
    %c0_10 = arith.constant 0 : index
    %12 = vector.load %arg5[%c0_9, %c0_10] : memref<1x128xf32, #tpu.memory_space<vmem>>, vector<1x128xf32>
    %13 = vector.broadcast %12 : vector<1x128xf32> to vector<16x128xf32>
    %14 = arith.addf %11, %13 : vector<16x128xf32>
    %cst_11 = arith.constant 0.000000e+00 : f32
    %15 = vector.broadcast %cst_11 : f32 to vector<16x128xf32>
    %16 = arith.maximumf %14, %15 : vector<16x128xf32>
    %17 = arith.truncf %16 : vector<16x128xf32> to vector<16x128xbf16>
    %c0_12 = arith.constant 0 : index
    %c0_13 = arith.constant 0 : index
    %18 = vector.load %arg6[%c0_12, %c0_13] : memref<128x128xbf16, #tpu.memory_space<vmem>>, vector<128x128xbf16>
    %cst_14 = arith.constant dense<0.000000e+00> : vector<16x128xf32>
    %19 = tpu.matmul %17, %18, %cst_14 {dimension_numbers = #tpu.dot_dimension_numbers<[1], [0], [0], [1], [0, 0, 1, 1], [], []>} : vector<16x128xbf16>, vector<128x128xbf16>, vector<16x128xf32> -> vector<16x128xf32>
    %c0_15 = arith.constant 0 : index
    %c0_16 = arith.constant 0 : index
    %20 = vector.load %arg7[%c0_15, %c0_16] : memref<1x128xf32, #tpu.memory_space<vmem>>, vector<1x128xf32>
    %21 = vector.broadcast %20 : vector<1x128xf32> to vector<16x128xf32>
    %22 = arith.addf %19, %21 : vector<16x128xf32>
    %23 = arith.truncf %22 : vector<16x128xf32> to vector<16x128xbf16>
    %c0_17 = arith.constant 0 : index
    %c0_18 = arith.constant 0 : index
    %24 = vector.load %arg8[%c0_17, %c0_18] : memref<16x128xbf16, #tpu.memory_space<vmem>>, vector<16x128xbf16>
    tpu.vector_store %arg8[%c0_17, %c0_18], %23 {strides = array<i32>} : memref<16x128xbf16, #tpu.memory_space<vmem>>, vector<16x128xbf16>,
    return
  }
  func.func @transform_0(%arg0: i32) -> (i32, i32) {
    %c0_i32 = arith.constant 0 : i32
    %c0_i32_0 = arith.constant 0 : i32
    return %arg0, %c0_i32 : i32, i32
  }
  func.func @transform_1(%arg0: i32) -> (i32, i32) {
    %c0_i32 = arith.constant 0 : i32
    %c0_i32_0 = arith.constant 0 : i32
    %c0_i32_1 = arith.constant 0 : i32
    return %c0_i32, %c0_i32_0 : i32, i32
  }
  func.func @transform_2(%arg0: i32) -> (i32, i32) {
    %c0_i32 = arith.constant 0 : i32
    %c0_i32_0 = arith.constant 0 : i32
    %c0_i32_1 = arith.constant 0 : i32
    return %c0_i32, %c0_i32_0 : i32, i32
  }
  func.func @transform_3(%arg0: i32) -> (i32, i32) {
    %c0_i32 = arith.constant 0 : i32
    %c0_i32_0 = arith.constant 0 : i32
    %c0_i32_1 = arith.constant 0 : i32
    return %c0_i32, %c0_i32_0 : i32, i32
  }
  func.func @transform_4(%arg0: i32) -> (i32, i32) {
    %c0_i32 = arith.constant 0 : i32
    %c0_i32_0 = arith.constant 0 : i32
    %c0_i32_1 = arith.constant 0 : i32
    return %c0_i32, %c0_i32_0 : i32, i32
  }
  func.func @transform_5(%arg0: i32) -> (i32, i32) {
    %c0_i32 = arith.constant 0 : i32
    %c0_i32_0 = arith.constant 0 : i32
    %c0_i32_1 = arith.constant 0 : i32
    return %c0_i32, %c0_i32_0 : i32, i32
  }
  func.func @transform_6(%arg0: i32) -> (i32, i32) {
    %c0_i32 = arith.constant 0 : i32
    %c0_i32_0 = arith.constant 0 : i32
    %c0_i32_1 = arith.constant 0 : i32
    return %c0_i32, %c0_i32_0 : i32, i32
  }
  func.func @transform_7(%arg0: i32) -> (i32, i32) {
    %c0_i32 = arith.constant 0 : i32
    %c0_i32_0 = arith.constant 0 : i32
    return %arg0, %c0_i32 : i32, i32
  }
}

</mosaic_0001>

<llo_original>
// kernel: tpu_custom_call.1
$region0: #{tpu_custom_call.1}
  #allocation0 [shape = 'u32[]', space=smem, size = 0x4, offset = 0x4, fixed_abs, tag = 'smem constant byte address 0x4 - core index']
  #allocation1 [shape = 'u32[72,128]{1,0:T(1,128)}', space=vmem, size = 0x9000, scoped, tag = 'internal scratch']
  %s0 = inlined_call_operand.hbm [shape: f32[2,8], index: 0, kind: input, shape index: {}]
  %s1 = inlined_call_operand.hbm [shape: bf16[8,128], index: 1, kind: input, shape index: {}]
  %s2 = inlined_call_operand.vmem [shape: f32[1,128], index: 2, kind: input, shape index: {}]
  %s3 = inlined_call_operand.hbm [shape: bf16[128,128], index: 3, kind: input, shape index: {}]
  %s4 = inlined_call_operand.vmem [shape: f32[1,128], index: 4, kind: input, shape index: {}]
  %s5 = inlined_call_operand.hbm [shape: bf16[128,128], index: 5, kind: input, shape index: {}]
  %s6 = inlined_call_operand.vmem [shape: f32[1,128], index: 6, kind: input, shape index: {}]
  %s7 = inlined_call_operand.hbm [shape: bf16[2,128], index: 7, kind: output, shape index: {}]
  %s8 = sld [smem:[#allocation0]]
  $region54: #{tpu_custom_call.1} parent=0
    _
  %s10 = ssub.s32 1, %s8
  %s11 = scalar_select 0, %s10, %s8
  $region1: #{tpu_custom_call.1} parent=0
    #allocation2 [shape = 'u8[8192]{0}', space=vmem, size = 0x2000, scoped, tag = 'input window, operand 0, single buffered']
    #allocation3 [shape = 's32[1]{0}', space=sflag, size = 0x4, scoped, tag = 'scoped memory for tpu_custom_call.1']
    #allocation4 [shape = 's32[1]{0}', space=sflag, size = 0x4, scoped, tag = 'scoped memory for tpu_custom_call.1']
    #allocation5 [shape = 'u8[2048]{0}', space=vmem, size = 0x800, scoped, tag = 'input window, operand 1, single buffered']
    #allocation6 [shape = 's32[1]{0}', space=sflag, size = 0x4, scoped, tag = 'scoped memory for tpu_custom_call.1']
    #allocation7 [shape = 'u8[32768]{0}', space=vmem, size = 0x8000, scoped, tag = 'input window, operand 3, single buffered']
    #allocation8 [shape = 'u8[32768]{0}', space=vmem, size = 0x8000, scoped, tag = 'input window, operand 5, single buffered']
    #allocation9 [shape = 's32[1]{0}', space=sflag, size = 0x4, scoped, tag = 'scoped memory for tpu_custom_call.1']
    #allocation10 [shape = 'u8[4096]{0}', space=vmem, size = 0x1000, scoped, tag = 'output window, operand 0, single buffered']
    %12 = vsyncpa [#allocation3], 0
    %13 = vsyncpa [#allocation6], 0
    %14 = vsyncpa [#allocation9], 0
    %15 = vsyncpa [#allocation4], 0
    // Predicated region
    $region2: #{tpu_custom_call.1} parent=1 // pred_check
      _
    $region3: #{tpu_custom_call.1} parent=1 // pred_check_branch
      %17 = sbr.rel (0) target = $region5
    $region4: #{tpu_custom_call.1} parent=1 // pred_region
      %19 = vsyncadd [#allocation3], 224
      %s20 = sshll.u32 %s0, 4
      %s21 = int_to_ptr.hbm [resolvable:$true] %s20
      %s22 = sshll.u32 [#allocation2], 4
      %s23 = int_to_ptr.vmem [resolvable:$true] %s22
      %28 = dma.hbm_to_vmem [thread:$0]  %s21, 32, %s23, [#allocation3], 32, 32, 2
    $region5: #{tpu_custom_call.1} parent=1 // pred_fallthru
      _
    // Predicated region
    $region6: #{tpu_custom_call.1} parent=1 // pred_check
      _
    $region7: #{tpu_custom_call.1} parent=1 // pred_check_branch
      %30 = sbr.rel (0) target = $region9
    $region8: #{tpu_custom_call.1} parent=1 // pred_region
      %32 = vsyncadd [#allocation6], 0
      %s34 = sshll.u32 %s1, 4
      %s35 = int_to_ptr.hbm [resolvable:$true] %s34
      %s36 = sshll.u32 [#allocation5], 4
      %s37 = int_to_ptr.vmem [resolvable:$true] %s36
      %39 = dma.hbm_to_vmem [thread:$0]  %s35, 64, %s37, [#allocation6]
    $region9: #{tpu_custom_call.1} parent=1 // pred_fallthru
      _
    // Predicated region
    $region10: #{tpu_custom_call.1} parent=1 // pred_check
      _
    $region11: #{tpu_custom_call.1} parent=1 // pred_check_branch
      %41 = sbr.rel (0) target = $region13
    $region12: #{tpu_custom_call.1} parent=1 // pred_region
      _
    $region13: #{tpu_custom_call.1} parent=1 // pred_fallthru
      _
    // Predicated region
    $region14: #{tpu_custom_call.1} parent=1 // pred_check
      _
    $region15: #{tpu_custom_call.1} parent=1 // pred_check_branch
      %43 = sbr.rel (0) target = $region17
    $region16: #{tpu_custom_call.1} parent=1 // pred_region
      %45 = vsyncadd [#allocation6], 0
      %s46 = sshll.u32 %s3, 4
      %s47 = int_to_ptr.hbm [resolvable:$true] %s46
      %s48 = sshll.u32 [#allocation7], 4
      %s49 = int_to_ptr.vmem [resolvable:$true] %s48
      %54 = dma.hbm_to_vmem [thread:$0]  %s47, 1024, %s49, [#allocation6], 64, 64, 4
    $region17: #{tpu_custom_call.1} parent=1 // pred_fallthru
      _
    // Predicated region
    $region18: #{tpu_custom_call.1} parent=1 // pred_check
      _
    $region19: #{tpu_custom_call.1} parent=1 // pred_check_branch
      %56 = sbr.rel (0) target = $region21
    $region20: #{tpu_custom_call.1} parent=1 // pred_region
      _
    $region21: #{tpu_custom_call.1} parent=1 // pred_fallthru
      _
    // Predicated region
    $region22: #{tpu_custom_call.1} parent=1 // pred_check
      _
    $region23: #{tpu_custom_call.1} parent=1 // pred_check_branch
      %58 = sbr.rel (0) target = $region25
    $region24: #{tpu_custom_call.1} parent=1 // pred_region
      %60 = vsyncadd [#allocation9], 0
      %s61 = sshll.u32 %s5, 4
      %s62 = int_to_ptr.hbm [resolvable:$true] %s61
      %s63 = sshll.u32 [#allocation8], 4
      %s64 = int_to_ptr.vmem [resolvable:$true] %s63
      %69 = dma.hbm_to_vmem [thread:$0]  %s62, 1024, %s64, [#allocation9], 64, 64, 4
    $region25: #{tpu_custom_call.1} parent=1 // pred_fallthru
      _
    // Predicated region
    $region26: #{tpu_custom_call.1} parent=1 // pred_check
      _
    $region27: #{tpu_custom_call.1} parent=1 // pred_check_branch
      %71 = sbr.rel (0) target = $region29
    $region28: #{tpu_custom_call.1} parent=1 // pred_region
      _
    $region29: #{tpu_custom_call.1} parent=1 // pred_fallthru
      _
    // Predicated region
    $region30: #{tpu_custom_call.1} parent=1 // pred_check
      _
    $region31: #{tpu_custom_call.1} parent=1 // pred_check_branch
      %73 = sbr.rel (0) target = $region33
    $region32: #{tpu_custom_call.1} parent=1 // pred_region
      %75 = dma.done [#allocation3], 256
    $region33: #{tpu_custom_call.1} parent=1 // pred_fallthru
      _
    // Predicated region
    $region34: #{tpu_custom_call.1} parent=1 // pred_check
      _
    $region35: #{tpu_custom_call.1} parent=1 // pred_check_branch
      %77 = sbr.rel (0) target = $region37
    $region36: #{tpu_custom_call.1} parent=1 // pred_region
      %79 = dma.done [#allocation6], 64
    $region37: #{tpu_custom_call.1} parent=1 // pred_fallthru
      _
    // Predicated region
    $region38: #{tpu_custom_call.1} parent=1 // pred_check
      _
    $region39: #{tpu_custom_call.1} parent=1 // pred_check_branch
      %81 = sbr.rel (0) target = $region41
    $region40: #{tpu_custom_call.1} parent=1 // pred_region
      %83 = dma.done [#allocation6], 1024
    $region41: #{tpu_custom_call.1} parent=1 // pred_fallthru
      _
    // Predicated region
    $region42: #{tpu_custom_call.1} parent=1 // pred_check
      _
    $region43: #{tpu_custom_call.1} parent=1 // pred_check_branch
      %85 = sbr.rel (0) target = $region45
    $region44: #{tpu_custom_call.1} parent=1 // pred_region
      %87 = dma.done [#allocation9], 1024
    $region45: #{tpu_custom_call.1} parent=1 // pred_fallthru
      _
    %v89 = vld [vmem:[#allocation2] sm:$0xff]
    %v90 = vld [vmem:[#allocation2 + $0x8] sm:$0xff]
    %v91 = vpack.c.bf16 %v90, %v89
    %v92 = vld [vmem:[#allocation5] sm:$0xf]
    %v93 = vld [vmem:[%s2] sm:$0x1]
    %v95 = vperm.slane %v93, 0
    %vm97 = vcmask 64512
    %v99 = vsel %vm97, %v91, 0
    %vm101 = vcmask 1043456
    %v103 = vsel %vm101, %v92, 0
    %105 = vmatpush.bf16.msra.mxu0 0
    %106 = vmatpush.bf16.msra.mxu0 0
    %107 = vmatpush.bf16.msra.mxu0 0
    %108 = vmatpush.bf16.msra.mxu0 0
    %109 = vmatpush.bf16.msra.mxu0 0
    %110 = vmatpush.bf16.msra.mxu0 0
    %111 = vmatpush.bf16.msra.mxu0 0
    %112 = vmatpush.bf16.msra.mxu0 %v103
    %113 = vmatmul.bf16.gmra.mxu0 %v99
    %v114 = vpop.f32.mrf.mxu0
    %v115 = vadd.f32 %v95, %v114
    %v116 = vpop.f32.mrf.mxu0
    %v117 = vadd.f32 %v95, %v116
    %118 = vdwg.mxu0
    %v119 = vmax.f32 %v115, 0.0
    %v120 = vmax.f32 %v117, 0.0
    %v121 = vpack.c.bf16 %v120, %v119
    %v122 = vld [vmem:[#allocation7] sm:$0xf]
    %v123 = vld [vmem:[#allocation7 + $0x4] sm:$0xf]
    %v124 = vld [vmem:[#allocation7 + $0x8] sm:$0xf]
    %v125 = vld [vmem:[#allocation7 + $0xc] sm:$0xf]
    %v126 = vld [vmem:[#allocation7 + $0x10] sm:$0xf]
    %v127 = vld [vmem:[#allocation7 + $0x14] sm:$0xf]
    %v128 = vld [vmem:[#allocation7 + $0x18] sm:$0xf]
    %v129 = vld [vmem:[#allocation7 + $0x1c] sm:$0xf]
    %v130 = vld [vmem:[#allocation7 + $0x20] sm:$0xf]
    %v131 = vld [vmem:[#allocation7 + $0x24] sm:$0xf]
    %v132 = vld [vmem:[#allocation7 + $0x28] sm:$0xf]
    %v133 = vld [vmem:[#allocation7 + $0x2c] sm:$0xf]
    %v134 = vld [vmem:[#allocation7 + $0x30] sm:$0xf]
    %v135 = vld [vmem:[#allocation7 + $0x34] sm:$0xf]
    %v136 = vld [vmem:[#allocation7 + $0x38] sm:$0xf]
    %v137 = vld [vmem:[#allocation7 + $0x3c] sm:$0xf]
    %v138 = vld [vmem:[%s4] sm:$0x1]
    %v140 = vperm.slane %v138, 0
    %v158 = vunpack.c.l.b16 %v122
    %v159 = vunpack.c.l.b16 %v123
    %v160 = vunpack.c.l.b16 %v124
    %v161 = vunpack.c.l.b16 %v125
    %v162 = vunpack.c.l.b16 %v126
    %v163 = vunpack.c.l.b16 %v127
    %v164 = vunpack.c.l.b16 %v128
    %v165 = vunpack.c.l.b16 %v129
    %v166 = vunpack.c.l.b16 %v130
    %v167 = vunpack.c.l.b16 %v131
    %v168 = vunpack.c.l.b16 %v132
    %v169 = vunpack.c.l.b16 %v133
    %v170 = vunpack.c.l.b16 %v134
    %v171 = vunpack.c.l.b16 %v135
    %v172 = vunpack.c.l.b16 %v136
    %v173 = vunpack.c.l.b16 %v137
    %v174 = vpack.c.b16 %v159, %v158
    %v175 = vpack.c.b16 %v161, %v160
    %v176 = vpack.c.b16 %v163, %v162
    %v177 = vpack.c.b16 %v165, %v164
    %v178 = vpack.c.b16 %v167, %v166
    %v179 = vpack.c.b16 %v169, %v168
    %v180 = vpack.c.b16 %v171, %v170
    %v181 = vpack.c.b16 %v173, %v172
    %190 = vmatpush.bf16.msra.mxu0 %v181
    %191 = vmatpush.bf16.msra.mxu0 %v180
    %192 = vmatpush.bf16.msra.mxu0 %v179
    %193 = vmatpush.bf16.msra.mxu0 %v178
    %194 = vmatpush.bf16.msra.mxu0 %v177
    %195 = vmatpush.bf16.msra.mxu0 %v176
    %196 = vmatpush.bf16.msra.mxu0 %v175
    %197 = vmatpush.bf16.msra.mxu0 %v174
    %198 = vmatmul.bf16.gmra.mxu0 %v121
    %v199 = vpop.f32.mrf.mxu0
    %v200 = vadd.f32 %v140, %v199
    %v201 = vpop.f32.mrf.mxu0
    %v202 = vadd.f32 %v140, %v201
    %203 = vdwg.mxu0
    %v204 = vmax.f32 %v200, 0.0
    %v205 = vmax.f32 %v202, 0.0
    %v206 = vpack.c.bf16 %v205, %v204
    %v207 = vld [vmem:[#allocation8] sm:$0xf]
    %v208 = vld [vmem:[#allocation8 + $0x4] sm:$0xf]
    %v209 = vld [vmem:[#allocation8 + $0x8] sm:$0xf]
    %v210 = vld [vmem:[#allocation8 + $0xc] sm:$0xf]
    %v211 = vld [vmem:[#allocation8 + $0x10] sm:$0xf]
    %v212 = vld [vmem:[#allocation8 + $0x14] sm:$0xf]
    %v213 = vld [vmem:[#allocation8 + $0x18] sm:$0xf]
    %v214 = vld [vmem:[#allocation8 + $0x1c] sm:$0xf]
    %v215 = vld [vmem:[#allocation8 + $0x20] sm:$0xf]
    %v216 = vld [vmem:[#allocation8 + $0x24] sm:$0xf]
    %v217 = vld [vmem:[#allocation8 + $0x28] sm:$0xf]
    %v218 = vld [vmem:[#allocation8 + $0x2c] sm:$0xf]
    %v219 = vld [vmem:[#allocation8 + $0x30] sm:$0xf]
    %v220 = vld [vmem:[#allocation8 + $0x34] sm:$0xf]
    %v221 = vld [vmem:[#allocation8 + $0x38] sm:$0xf]
    %v222 = vld [vmem:[#allocation8 + $0x3c] sm:$0xf]
    %v223 = vld [vmem:[%s6] sm:$0x1]
    %v225 = vperm.slane %v223, 0
    %v243 = vunpack.c.l.b16 %v207
    %v244 = vunpack.c.l.b16 %v208
    %v245 = vunpack.c.l.b16 %v209
    %v246 = vunpack.c.l.b16 %v210
    %v247 = vunpack.c.l.b16 %v211
    %v248 = vunpack.c.l.b16 %v212
    %v249 = vunpack.c.l.b16 %v213
    %v250 = vunpack.c.l.b16 %v214
    %v251 = vunpack.c.l.b16 %v215
    %v252 = vunpack.c.l.b16 %v216
    %v253 = vunpack.c.l.b16 %v217
    %v254 = vunpack.c.l.b16 %v218
    %v255 = vunpack.c.l.b16 %v219
    %v256 = vunpack.c.l.b16 %v220
    %v257 = vunpack.c.l.b16 %v221
    %v258 = vunpack.c.l.b16 %v222
    %v259 = vpack.c.b16 %v244, %v243
    %v260 = vpack.c.b16 %v246, %v245
    %v261 = vpack.c.b16 %v248, %v247
    %v262 = vpack.c.b16 %v250, %v249
    %v263 = vpack.c.b16 %v252, %v251
    %v264 = vpack.c.b16 %v254, %v253
    %v265 = vpack.c.b16 %v256, %v255
    %v266 = vpack.c.b16 %v258, %v257
    %275 = vmatpush.bf16.msra.mxu0 %v266
    %276 = vmatpush.bf16.msra.mxu0 %v265
    %277 = vmatpush.bf16.msra.mxu0 %v264
    %278 = vmatpush.bf16.msra.mxu0 %v263
    %279 = vmatpush.bf16.msra.mxu0 %v262
    %280 = vmatpush.bf16.msra.mxu0 %v261
    %281 = vmatpush.bf16.msra.mxu0 %v260
    %282 = vmatpush.bf16.msra.mxu0 %v259
    %283 = vmatmul.bf16.gmra.mxu0 %v206
    %v284 = vpop.f32.mrf.mxu0
    %v285 = vadd.f32 %v225, %v284
    %v286 = vpop.f32.mrf.mxu0
    %v287 = vadd.f32 %v225, %v286
    %288 = vdwg.mxu0
    %v289 = vpack.c.bf16 %v285, %v285
    %v290 = vpack.c.bf16 %v287, %v287
    %v293 = vrot.slane %v289, 3
    %v294 = vrot.slane %v290, 3
    %vm295 = vcmask 1040384
    %v298 = vsel %vm295, %v289, %v293
    %vm299 = vcmask 1041409
    %v300 = vsel %vm299, %v289, %v293
    %v302 = vrot.slane %v300, 1
    %vm303 = vcmask 1042434
    %v304 = vsel %vm303, %v289, %v293
    %v306 = vrot.slane %v304, 2
    %vm307 = vcmask 1043459
    %v308 = vsel %vm307, %v289, %v293
    %v310 = vrot.slane %v308, 3
    %v313 = vsel %vm295, %v290, %v294
    %v314 = vsel %vm299, %v290, %v294
    %v316 = vrot.slane %v314, 1
    %v317 = vsel %vm303, %v290, %v294
    %v319 = vrot.slane %v317, 2
    %v320 = vsel %vm307, %v290, %v294
    %v322 = vrot.slane %v320, 3
    %331 = vst [vmem:[#allocation10] sm:$0x1] %v298
    %332 = vst [vmem:[#allocation10 + $0x1] sm:$0x1] %v302
    %333 = vst [vmem:[#allocation10 + $0x2] sm:$0x1] %v306
    %334 = vst [vmem:[#allocation10 + $0x3] sm:$0x1] %v310
    %335 = vst [vmem:[#allocation10 + $0x4] sm:$0x1] %v313
    %336 = vst [vmem:[#allocation10 + $0x5] sm:$0x1] %v316
    %337 = vst [vmem:[#allocation10 + $0x6] sm:$0x1] %v319
    %338 = vst [vmem:[#allocation10 + $0x7] sm:$0x1] %v322
    // Predicated region
    $region46: #{tpu_custom_call.1} parent=1 // pred_check
      _
    $region47: #{tpu_custom_call.1} parent=1 // pred_check_branch
      %340 = sbr.rel (0) target = $region49
    $region48: #{tpu_custom_call.1} parent=1 // pred_region
      %342 = vsyncadd [#allocation4], 112
      %s343 = sshll.u32 [#allocation10], 4
      %s344 = int_to_ptr.vmem [resolvable:$true] %s343
      %s345 = sshll.u32 %s7, 4
      %s346 = int_to_ptr.hbm [resolvable:$true] %s345
      %351 = dma.vmem_to_hbm [thread:$0]  %s344, 16, %s346, [#allocation4], 16, 16, 1
    $region49: #{tpu_custom_call.1} parent=1 // pred_fallthru
      _
    // Predicated region
    $region50: #{tpu_custom_call.1} parent=1 // pred_check
      _
    $region51: #{tpu_custom_call.1} parent=1 // pred_check_branch
      %353 = sbr.rel (0) target = $region53
    $region52: #{tpu_custom_call.1} parent=1 // pred_region
      %355 = dma.done [#allocation4], 128
    $region53: #{tpu_custom_call.1} parent=1 // pred_fallthru
      _
    %356 = vsyncpa [#allocation3], 1
    %357 = vsyncpa [#allocation6], 1
    %358 = vsyncpa [#allocation9], 1
    %359 = vsyncpa [#allocation4], 1

</llo_original>
